<compile_context>
chip_gen: v6e
topology: v6e:2x2x1
jax: 0.10.0
libtpu: 0.0.40
codegen_flags: <defaults>
</compile_context>

<pallas_src>
import jax
import jax.numpy as jnp
from jax import lax
from jax.experimental import pallas as pl
from jax.experimental.pallas import tpu as pltpu

BN_EPS = 1e-5


def _attn_value_kernel(attn_ref, v_ref, o_ref):
    """attn_ref: (Nb, C, C); v_ref / o_ref: (Nb, C, THW).  Batched GEMM on MXU."""
    o_ref[...] = lax.dot_general(
        attn_ref[...], v_ref[...],
        dimension_numbers=(((2,), (1,)), ((0,), (0,))),
        preferred_element_type=jnp.float32,
    ).astype(o_ref.dtype)


def _pick_tile_hw(hw, max_tile=2048):
    """Largest divisor of HW that is a multiple of 128 (<= max_tile); else full HW."""
    t = (max_tile // 128) * 128
    while t >= 128:
        if hw % t == 0:
            return t
        t -= 128
    return hw  # full-extent block is always legal


def _pick_nb(n, c):
    """Pack several batch elements per grid step when C is small (fill sublanes)."""
    if c >= 8:
        return 1
    target = max(1, 8 // max(c, 1))
    nb = 1
    for d in range(1, n + 1):
        if n % d == 0 and d <= target:
            nb = d
    return nb


def gca_forward(x, q_w, k_w, bn_q, bn_k):
    """x: (N, C, H, W) f32. q_w/k_w: (3,) conv weights. bn_*: (gamma, beta, mean, var)."""
    N, C, H, W = x.shape
    HW = H * W
    value = x.reshape(N, C, HW)

    # ---- tiny precompute (N*C and N*C*C elements) in plain JAX ----
    m = jnp.mean(value, axis=-1)                         # (N, C), mean over true HW
    mp = jnp.pad(m, ((0, 0), (1, 1)))                    # zero-pad channel axis

    def conv_bn_sig(w, bn):
        # Conv1d(1,1,k=3,pad=1,bias=False) over channels as a 3-tap shift-and-add.
        pre = w[0] * mp[:, :-2] + w[1] * mp[:, 1:-1] + w[2] * mp[:, 2:]
        gamma, beta, mu, var = bn[0], bn[1], bn[2], bn[3]
        scale = gamma * lax.rsqrt(var + BN_EPS)          # fold BN into scale/bias
        bias = beta - mu * scale
        return jax.nn.sigmoid(pre * scale + bias)

    q = conv_bn_sig(q_w, bn_q)                           # (N, C)
    k = conv_bn_sig(k_w, bn_k)                           # (N, C)
    attn = jax.nn.softmax(q[:, :, None] * k[:, None, :], axis=-1)   # (N, C, C)

    # ---- heavy part: attn @ value as a tiled Pallas GEMM ----
    tile_hw = _pick_tile_hw(HW)
    nb = _pick_nb(N, C)
    grid = (N // nb, HW // tile_hw)

    out = pl.pallas_call(
        _attn_value_kernel,
        out_shape=jax.ShapeDtypeStruct((N, C, HW), x.dtype),
        grid=grid,
        in_specs=[
            pl.BlockSpec((nb, C, C), lambda b, h: (b, 0, 0)),        # attention
            pl.BlockSpec((nb, C, tile_hw), lambda b, h: (b, 0, h)),  # value tile
        ],
        out_specs=pl.BlockSpec((nb, C, tile_hw), lambda b, h: (b, 0, h)),
        compiler_params=pltpu.CompilerParams(
            dimension_semantics=("parallel", "parallel")),
    )(attn, value)
    return out.reshape(N, C, H, W)


def gca_reference(x, q_w, k_w, bn_q, bn_k):
    """Pure-JAX reference matching the PyTorch forward (eval-mode BN)."""
    N, C, H, W = x.shape
    value = x.reshape(N, C, H * W)
    m = x.mean(axis=(2, 3))                              # (N, C)

    def conv_bn_sig(w, bn):
        mp = jnp.pad(m, ((0, 0), (1, 1)))
        pre = w[0] * mp[:, :-2] + w[1] * mp[:, 1:-1] + w[2] * mp[:, 2:]
        gamma, beta, mu, var = bn[0], bn[1], bn[2], bn[3]
        return jax.nn.sigmoid((pre - mu) / jnp.sqrt(var + BN_EPS) * gamma + beta)

    q = conv_bn_sig(q_w, bn_q)                           # (N, C)
    k = conv_bn_sig(k_w, bn_k)                           # (N, C)
    s = q[:, :, None] * k[:, None, :]                    # (N, C, C)
    attn = jax.nn.softmax(s, axis=-1)
    out = jnp.einsum('ncd,ndp->ncp', attn, value)
    return out.reshape(N, C, H, W)


if __name__ == "__main__":
    key = jax.random.PRNGKey(0)
    kx, kq, kk = jax.random.split(key, 3)

    N, C, H, W = 2, 4, 16, 16
    x = jax.random.normal(kx, (N, C, H, W), jnp.float32)

    # Conv1d(1, 1, 3, bias=False) weights (PyTorch shape (1,1,3), flattened to (3,)).
    q_w = 0.5 * jax.random.normal(kq, (3,), jnp.float32)
    k_w = 0.5 * jax.random.normal(kk, (3,), jnp.float32)

    # BatchNorm1d(1) eval-mode params: [gamma, beta, running_mean, running_var].
    bn_q = jnp.array([1.10, 0.05, 0.02, 0.90], jnp.float32)
    bn_k = jnp.array([0.90, -0.03, -0.01, 1.10], jnp.float32)

    out = gca_forward(x, q_w, k_w, bn_q, bn_k)
    jax.block_until_ready(out)

    ref = gca_reference(x, q_w, k_w, bn_q, bn_k)
    max_err = float(jnp.max(jnp.abs(out - ref)))
    assert out.shape == (N, C, H, W)
    assert jnp.allclose(out, ref, atol=1e-4, rtol=1e-4), f"max abs err {max_err}"

    print("KERNEL_OK")
</pallas_src>

<mosaic_0001>
module attributes {stable_mosaic.version = 11 : i64} {
  func.func @_attn_value_kernel(%arg0: i32, %arg1: i32, %arg2: memref<2x4x4xf32, #tpu.memory_space<vmem>>, %arg3: memref<2x4x256xf32, #tpu.memory_space<vmem>>, %arg4: memref<2x4x256xf32, #tpu.memory_space<vmem>>) attributes {dimension_semantics = [#tpu.dimension_semantics<parallel>, #tpu.dimension_semantics<parallel>], iteration_bounds = array<i64: 1, 1>, scalar_prefetch = 0 : i64, scratch_operands = 0 : i64, tpu.core_type = #tpu.core_type<tc>, window_params = [{transform_indices = @transform_0, window_bounds = array<i64: 2, 4, 4>}, {transform_indices = @transform_1, window_bounds = array<i64: 2, 4, 256>}, {transform_indices = @transform_2, window_bounds = array<i64: 2, 4, 256>}]} {
    %c0 = arith.constant 0 : index
    %c0_0 = arith.constant 0 : index
    %c0_1 = arith.constant 0 : index
    %0 = vector.load %arg2[%c0, %c0_0, %c0_1] : memref<2x4x4xf32, #tpu.memory_space<vmem>>, vector<2x4x4xf32>
    %c0_2 = arith.constant 0 : index
    %c0_3 = arith.constant 0 : index
    %c0_4 = arith.constant 0 : index
    %1 = vector.load %arg3[%c0_2, %c0_3, %c0_4] : memref<2x4x256xf32, #tpu.memory_space<vmem>>, vector<2x4x256xf32>
    %cst = arith.constant dense<0.000000e+00> : vector<2x4x256xf32>
    %2 = tpu.matmul %0, %1, %cst {dimension_numbers = #tpu.dot_dimension_numbers<[2], [1], [1], [2], [0, 0, 0, 1, 1, 2], [0], [0]>} : vector<2x4x4xf32>, vector<2x4x256xf32>, vector<2x4x256xf32> -> vector<2x4x256xf32>
    %c0_5 = arith.constant 0 : index
    %c0_6 = arith.constant 0 : index
    %c0_7 = arith.constant 0 : index
    %3 = vector.load %arg4[%c0_5, %c0_6, %c0_7] : memref<2x4x256xf32, #tpu.memory_space<vmem>>, vector<2x4x256xf32>
    tpu.vector_store %arg4[%c0_5, %c0_6, %c0_7], %2 {strides = array<i32>} : memref<2x4x256xf32, #tpu.memory_space<vmem>>, vector<2x4x256xf32>,
    return
  }
  func.func @transform_0(%arg0: i32, %arg1: i32) -> (i32, i32, i32) {
    %c0_i32 = arith.constant 0 : i32
    %c0_i32_0 = arith.constant 0 : i32
    %c0_i32_1 = arith.constant 0 : i32
    return %arg0, %c0_i32, %c0_i32_0 : i32, i32, i32
  }
  func.func @transform_1(%arg0: i32, %arg1: i32) -> (i32, i32, i32) {
    %c0_i32 = arith.constant 0 : i32
    %c0_i32_0 = arith.constant 0 : i32
    return %arg0, %c0_i32, %arg1 : i32, i32, i32
  }
  func.func @transform_2(%arg0: i32, %arg1: i32) -> (i32, i32, i32) {
    %c0_i32 = arith.constant 0 : i32
    %c0_i32_0 = arith.constant 0 : i32
    return %arg0, %c0_i32, %arg1 : i32, i32, i32
  }
}

</mosaic_0001>

<llo_original>
// kernel: tpu_custom_call.1
$region0: #{tpu_custom_call.1}
  #allocation0 [shape = 'u32[]', space=smem, size = 0x4, offset = 0x4, fixed_abs, tag = 'smem constant byte address 0x4 - core index']
  #allocation1 [shape = 'u32[144,128]{1,0:T(1,128)}', space=vmem, size = 0x12000, scoped, tag = 'internal scratch']
  %s0 = inlined_call_operand.hbm [shape: f32[2,4,4], index: 0, kind: input, shape index: {}]
  %s1 = inlined_call_operand.hbm [shape: f32[2,4,256], index: 1, kind: input, shape index: {}]
  %s2 = inlined_call_operand.hbm [shape: f32[2,4,256], index: 2, kind: output, shape index: {}]
  %s3 = sld [smem:[#allocation0]]
  $region26: #{tpu_custom_call.1} parent=0
    _
  %s5 = ssub.s32 1, %s3
  %s6 = scalar_select 0, %s5, %s3
  $region1: #{tpu_custom_call.1} parent=0
    #allocation2 [shape = 'u8[4096]{0}', space=vmem, size = 0x1000, scoped, tag = 'input window, operand 0, single buffered']
    #allocation3 [shape = 's32[1]{0}', space=sflag, size = 0x4, scoped, tag = 'scoped memory for tpu_custom_call.1']
    #allocation4 [shape = 's32[1]{0}', space=sflag, size = 0x4, scoped, tag = 'scoped memory for tpu_custom_call.1']
    #allocation5 [shape = 'u8[8192]{0}', space=vmem, size = 0x2000, scoped, tag = 'input window, operand 1, single buffered']
    #allocation6 [shape = 's32[1]{0}', space=sflag, size = 0x4, scoped, tag = 'scoped memory for tpu_custom_call.1']
    #allocation7 [shape = 'u8[8192]{0}', space=vmem, size = 0x2000, scoped, tag = 'output window, operand 0, single buffered']
    %7 = vsyncpa [#allocation3], 0
    %8 = vsyncpa [#allocation6], 0
    %9 = vsyncpa [#allocation4], 0
    // Predicated region
    $region2: #{tpu_custom_call.1} parent=1 // pred_check
      _
    $region3: #{tpu_custom_call.1} parent=1 // pred_check_branch
      %11 = sbr.rel (0) target = $region5
    $region4: #{tpu_custom_call.1} parent=1 // pred_region
      %s13 = ssub.s32 128, 128
      %14 = vsyncadd [#allocation3], %s13
      %s15 = sshll.u32 [#allocation2], 4
      %s16 = int_to_ptr.vmem [resolvable:$true] %s15
      %21 = dma.hbm_to_vmem [thread:$0]  %s0, 128, %s16, [#allocation3], 64, 64, 4
    $region5: #{tpu_custom_call.1} parent=1 // pred_fallthru
      _
    // Predicated region
    $region6: #{tpu_custom_call.1} parent=1 // pred_check
      _
    $region7: #{tpu_custom_call.1} parent=1 // pred_check_branch
      %23 = sbr.rel (0) target = $region9
    $region8: #{tpu_custom_call.1} parent=1 // pred_region
      %s25 = ssub.s32 256, 256
      %26 = vsyncadd [#allocation6], %s25
      %s27 = sshll.u32 [#allocation5], 4
      %s28 = int_to_ptr.vmem [resolvable:$true] %s27
      %33 = dma.hbm_to_vmem [thread:$0]  %s1, 256, %s28, [#allocation6], 128, 128, 8
    $region9: #{tpu_custom_call.1} parent=1 // pred_fallthru
      _
    // Predicated region
    $region10: #{tpu_custom_call.1} parent=1 // pred_check
      _
    $region11: #{tpu_custom_call.1} parent=1 // pred_check_branch
      %35 = sbr.rel (0) target = $region13
    $region12: #{tpu_custom_call.1} parent=1 // pred_region
      %36 = dma.done [#allocation3], 128
    $region13: #{tpu_custom_call.1} parent=1 // pred_fallthru
      _
    // Predicated region
    $region14: #{tpu_custom_call.1} parent=1 // pred_check
      _
    $region15: #{tpu_custom_call.1} parent=1 // pred_check_branch
      %38 = sbr.rel (0) target = $region17
    $region16: #{tpu_custom_call.1} parent=1 // pred_region
      %39 = dma.done [#allocation6], 256
    $region17: #{tpu_custom_call.1} parent=1 // pred_fallthru
      _
    %v40 = vld [vmem:[#allocation2] sm:$0xf]
    %v41 = vld [vmem:[#allocation2 + $0x4] sm:$0xf]
    %v42 = vld [vmem:[#allocation5] sm:$0xff]
    %v43 = vld [vmem:[#allocation5 + $0x8] sm:$0xff]
    %v45 = vcombine.high %v42, %v42
    %vm46 = vcmask 31744
    %v48 = vsel %vm46, %v40, 0
    %vm50 = vcmask 1043456
    %v51 = vsel %vm50, %v42, 0
    %v53 = vsel %vm50, %v45, 0
    %55 = vmatprep.subr.mxu0 0.0
    %56 = vmatpush1.msra.mxu0 0.0
    %57 = vmatprep.subr.mxu0 0.0
    %58 = vmatpush1.msra.mxu0 0.0
    %59 = vmatprep.subr.mxu0 0.0
    %60 = vmatpush1.msra.mxu0 0.0
    %61 = vmatprep.subr.mxu0 0.0
    %62 = vmatpush1.msra.mxu0 0.0
    %63 = vmatprep.subr.mxu0 0.0
    %64 = vmatpush1.msra.mxu0 0.0
    %65 = vmatprep.subr.mxu0 0.0
    %66 = vmatpush1.msra.mxu0 0.0
    %67 = vmatprep.subr.mxu0 0.0
    %68 = vmatpush1.msra.mxu0 0.0
    %69 = vmatprep.subr.mxu0 0.0
    %70 = vmatpush1.msra.mxu0 0.0
    %71 = vmatprep.subr.mxu0 0.0
    %72 = vmatpush1.msra.mxu0 0.0
    %73 = vmatprep.subr.mxu0 0.0
    %74 = vmatpush1.msra.mxu0 0.0
    %75 = vmatprep.subr.mxu0 0.0
    %76 = vmatpush1.msra.mxu0 0.0
    %77 = vmatprep.subr.mxu0 0.0
    %78 = vmatpush1.msra.mxu0 0.0
    %79 = vmatprep.subr.mxu0 0.0
    %80 = vmatpush1.msra.mxu0 0.0
    %81 = vmatprep.subr.mxu0 0.0
    %82 = vmatpush1.msra.mxu0 0.0
    %83 = vmatprep.subr.mxu0 0.0
    %84 = vmatpush1.msra.mxu0 0.0
    %85 = vmatprep.subr.mxu0 %v53
    %86 = vmatpush1.msra.mxu0 %v51
    %87 = vmatprep.subr.mxu0 0.0
    %88 = vmatpush2.msra.mxu0 0.0
    %89 = vmatprep.subr.mxu0 0.0
    %90 = vmatpush2.msra.mxu0 0.0
    %91 = vmatprep.subr.mxu0 0.0
    %92 = vmatpush2.msra.mxu0 0.0
    %93 = vmatprep.subr.mxu0 0.0
    %94 = vmatpush2.msra.mxu0 0.0
    %95 = vmatprep.subr.mxu0 0.0
    %96 = vmatpush2.msra.mxu0 0.0
    %97 = vmatprep.subr.mxu0 0.0
    %98 = vmatpush2.msra.mxu0 0.0
    %99 = vmatprep.subr.mxu0 0.0
    %100 = vmatpush2.msra.mxu0 0.0
    %101 = vmatprep.subr.mxu0 0.0
    %102 = vmatpush2.msra.mxu0 0.0
    %103 = vmatprep.subr.mxu0 0.0
    %104 = vmatpush2.msra.mxu0 0.0
    %105 = vmatprep.subr.mxu0 0.0
    %106 = vmatpush2.msra.mxu0 0.0
    %107 = vmatprep.subr.mxu0 0.0
    %108 = vmatpush2.msra.mxu0 0.0
    %109 = vmatprep.subr.mxu0 0.0
    %110 = vmatpush2.msra.mxu0 0.0
    %111 = vmatprep.subr.mxu0 0.0
    %112 = vmatpush2.msra.mxu0 0.0
    %113 = vmatprep.subr.mxu0 0.0
    %114 = vmatpush2.msra.mxu0 0.0
    %115 = vmatprep.subr.mxu0 0.0
    %116 = vmatpush2.msra.mxu0 0.0
    %117 = vmatprep.subr.mxu0 0.0
    %118 = vmatpush2.msra.mxu0 0.0
    %119 = vmatprep.mubr.f32.mxu0 0.0
    %120 = vmatmul.mubr.f32.gmra.mxu0 %v48
    %v121 = vpop.f32.mrf.mxu0
    %v122 = vadd.f32 0.0, %v121
    %v123 = vpop.f32.mrf.mxu0
    %v124 = vadd.f32 0.0, %v123
    %125 = vdwg.mxu0
    %v127 = vcombine.high %v43, %v43
    %v129 = vsel %vm46, %v41, 0
    %v131 = vsel %vm50, %v43, 0
    %v133 = vsel %vm50, %v127, 0
    %135 = vmatprep.subr.mxu0 0.0
    %136 = vmatpush1.msra.mxu0 0.0
    %137 = vmatprep.subr.mxu0 0.0
    %138 = vmatpush1.msra.mxu0 0.0
    %139 = vmatprep.subr.mxu0 0.0
    %140 = vmatpush1.msra.mxu0 0.0
    %141 = vmatprep.subr.mxu0 0.0
    %142 = vmatpush1.msra.mxu0 0.0
    %143 = vmatprep.subr.mxu0 0.0
    %144 = vmatpush1.msra.mxu0 0.0
    %145 = vmatprep.subr.mxu0 0.0
    %146 = vmatpush1.msra.mxu0 0.0
    %147 = vmatprep.subr.mxu0 0.0
    %148 = vmatpush1.msra.mxu0 0.0
    %149 = vmatprep.subr.mxu0 0.0
    %150 = vmatpush1.msra.mxu0 0.0
    %151 = vmatprep.subr.mxu0 0.0
    %152 = vmatpush1.msra.mxu0 0.0
    %153 = vmatprep.subr.mxu0 0.0
    %154 = vmatpush1.msra.mxu0 0.0
    %155 = vmatprep.subr.mxu0 0.0
    %156 = vmatpush1.msra.mxu0 0.0
    %157 = vmatprep.subr.mxu0 0.0
    %158 = vmatpush1.msra.mxu0 0.0
    %159 = vmatprep.subr.mxu0 0.0
    %160 = vmatpush1.msra.mxu0 0.0
    %161 = vmatprep.subr.mxu0 0.0
    %162 = vmatpush1.msra.mxu0 0.0
    %163 = vmatprep.subr.mxu0 0.0
    %164 = vmatpush1.msra.mxu0 0.0
    %165 = vmatprep.subr.mxu0 %v133
    %166 = vmatpush1.msra.mxu0 %v131
    %167 = vmatprep.subr.mxu0 0.0
    %168 = vmatpush2.msra.mxu0 0.0
    %169 = vmatprep.subr.mxu0 0.0
    %170 = vmatpush2.msra.mxu0 0.0
    %171 = vmatprep.subr.mxu0 0.0
    %172 = vmatpush2.msra.mxu0 0.0
    %173 = vmatprep.subr.mxu0 0.0
    %174 = vmatpush2.msra.mxu0 0.0
    %175 = vmatprep.subr.mxu0 0.0
    %176 = vmatpush2.msra.mxu0 0.0
    %177 = vmatprep.subr.mxu0 0.0
    %178 = vmatpush2.msra.mxu0 0.0
    %179 = vmatprep.subr.mxu0 0.0
    %180 = vmatpush2.msra.mxu0 0.0
    %181 = vmatprep.subr.mxu0 0.0
    %182 = vmatpush2.msra.mxu0 0.0
    %183 = vmatprep.subr.mxu0 0.0
    %184 = vmatpush2.msra.mxu0 0.0
    %185 = vmatprep.subr.mxu0 0.0
    %186 = vmatpush2.msra.mxu0 0.0
    %187 = vmatprep.subr.mxu0 0.0
    %188 = vmatpush2.msra.mxu0 0.0
    %189 = vmatprep.subr.mxu0 0.0
    %190 = vmatpush2.msra.mxu0 0.0
    %191 = vmatprep.subr.mxu0 0.0
    %192 = vmatpush2.msra.mxu0 0.0
    %193 = vmatprep.subr.mxu0 0.0
    %194 = vmatpush2.msra.mxu0 0.0
    %195 = vmatprep.subr.mxu0 0.0
    %196 = vmatpush2.msra.mxu0 0.0
    %197 = vmatprep.subr.mxu0 0.0
    %198 = vmatpush2.msra.mxu0 0.0
    %199 = vmatprep.mubr.f32.mxu0 0.0
    %200 = vmatmul.mubr.f32.gmra.mxu0 %v129
    %v201 = vpop.f32.mrf.mxu0
    %v202 = vadd.f32 0.0, %v201
    %v203 = vpop.f32.mrf.mxu0
    %v204 = vadd.f32 0.0, %v203
    %205 = vdwg.mxu0
    %v210 = vcombine.low %v122, %v124
    %v211 = vcombine.low %v202, %v204
    %214 = vst [vmem:[#allocation7] sm:$0xff] %v210
    %215 = vst [vmem:[#allocation7 + $0x8] sm:$0xff] %v211
    // Predicated region
    $region18: #{tpu_custom_call.1} parent=1 // pred_check
      _
    $region19: #{tpu_custom_call.1} parent=1 // pred_check_branch
      %217 = sbr.rel (0) target = $region21
    $region20: #{tpu_custom_call.1} parent=1 // pred_region
      %s219 = ssub.s32 256, 256
      %220 = vsyncadd [#allocation4], %s219
      %s221 = sshll.u32 [#allocation7], 4
      %s222 = int_to_ptr.vmem [resolvable:$true] %s221
      %227 = dma.vmem_to_hbm [thread:$0]  %s222, 256, %s2, [#allocation4], 128, 128, 8
    $region21: #{tpu_custom_call.1} parent=1 // pred_fallthru
      _
    // Predicated region
    $region22: #{tpu_custom_call.1} parent=1 // pred_check
      _
    $region23: #{tpu_custom_call.1} parent=1 // pred_check_branch
      %229 = sbr.rel (0) target = $region25
    $region24: #{tpu_custom_call.1} parent=1 // pred_region
      %230 = dma.done [#allocation4], 256
    $region25: #{tpu_custom_call.1} parent=1 // pred_fallthru
      _
    %231 = vsyncpa [#allocation3], 1
    %232 = vsyncpa [#allocation6], 1
    %233 = vsyncpa [#allocation4], 1

</llo_original>
